<compile_context>
chip_gen: v7x
topology: tpu7x:2x2x1
jax: 0.10.0
libtpu: 0.0.40
codegen_flags: <defaults>
</compile_context>

<pallas_src>
import jax
import jax.numpy as jnp
from jax import lax
from jax.experimental import pallas as pl
from jax.experimental.pallas import tpu as pltpu

_VMEM_LIMIT_BYTES = 48 * 1024 * 1024
_PAD_LABEL = jnp.iinfo(jnp.int32).min  # sentinel; never equals a real label


def _round_up(n, m):
    return ((n + m - 1) // m) * m


def _pick_block(n, candidates=(512, 256, 128)):
    """Largest preferred tile that evenly divides n, else the full extent."""
    for c in candidates:
        if n % c == 0:
            return c
    return n


def _stage2_blocks(b):
    """(blk_q, blk_k, padded B) for the streamed loss kernel."""
    if b <= 512:
        b_pad = _round_up(b, 8)          # sublane multiple; one tile per axis
        return b_pad, b_pad, b_pad
    b_pad = _round_up(b, 256)
    blk_q = 256                          # >=2 (even) q-tiles -> both v7x TCs
    blk_k = 256                          # lane-dense, multiple of 256
    for c in (1024, 512):                # largest legal contrast tile
        if b_pad % c == 0:
            blk_k = c
            break
    # blk_q * blk_k <= 256*1024 keeps the ~5 live f32 (blk_q, blk_k)
    # intermediates per step well inside the v7x 64 MiB physical VMEM.
    return blk_q, blk_k, b_pad


def _eup_has_bf16():
    """True on chips whose EUP has a bf16 transcendental path (v6e, v7x)."""
    try:
        kind = jax.devices()[0].device_kind.lower()
    except Exception:
        return False
    return ("v6" in kind) or ("v7" in kind)


# ----------------------------------------------------------------------------
# Stage 1: projection head  z = l2norm(relu(x @ W1 + b1) @ W2 + b2)
# ----------------------------------------------------------------------------
def _embed_kernel(x_ref, w1_ref, b1_ref, w2_ref, b2_ref, z_ref):
    h = jnp.dot(x_ref[...], w1_ref[...],
                preferred_element_type=jnp.float32) + b1_ref[...]
    h = jnp.maximum(h, 0.0)
    z = jnp.dot(h.astype(jnp.bfloat16), w2_ref[...],
                preferred_element_type=jnp.float32) + b2_ref[...]
    # PyTorch module normalizes twice (Embed.l2norm then SupConLoss.l2norm);
    # the second pass is a no-op on a unit vector, so normalize once (rsqrt
    # runs on the EUP slot, keeping the VALU free).
    inv_norm = lax.rsqrt(jnp.sum(z * z, axis=1, keepdims=True))
    z_ref[...] = (z * inv_norm).astype(z_ref.dtype)


# ----------------------------------------------------------------------------
# Stage 2: tiled SupCon loss over (anchor rows, streamed contrast columns)
# ----------------------------------------------------------------------------
def _make_loss_kernel(inv_temp, blk_q, blk_k, b_real, b_pad, use_bf16_exp):
    needs_pad = b_pad != b_real

    def kernel(zq_ref, zk_ref, labq_ref, labk_ref, out_ref,
               denom_acc, pos_sum_acc, pos_cnt_acc):
        q = pl.program_id(0)
        k = pl.program_id(1)

        @pl.when(k == 0)
        def _():
            denom_acc[...] = jnp.zeros_like(denom_acc)
            pos_sum_acc[...] = jnp.zeros_like(pos_sum_acc)
            pos_cnt_acc[...] = jnp.zeros_like(pos_cnt_acc)

        # Similarity tile without transposing zk: contract the lane axis of
        # both operands on the MXU, bf16-in / f32-accumulate.
        s = lax.dot_general(
            zq_ref[...], zk_ref[...],
            dimension_numbers=(((1,), (1,)), ((), ())),
            preferred_element_type=jnp.float32)
        same = labq_ref[...] == labk_ref[...]

        def exp_logits():
            # Rows of z are unit-norm, so the reference's row-max equals the
            # (masked) self-similarity == 1; log-softmax shift invariance lets
            # us use the constant shift (s - 1) / T instead of a BxB max.
            lg = (s - 1.0) * inv_temp
            if use_bf16_exp:
                # bf16 EUP path (v6e/v7x): ~2x exp throughput; the row-sum
                # accumulation below stays in f32.
                return jnp.exp(lg.astype(jnp.bfloat16)).astype(jnp.float32)
            return jnp.exp(lg)

        def accumulate(keep):
            e = exp_logits()
            pos = same
            if keep is not None:
                e = jnp.where(keep, e, 0.0)
                pos = jnp.logical_and(pos, keep)
            cnt = jnp.sum(pos.astype(jnp.float32), axis=1, keepdims=True)
            pos_s = jnp.sum(jnp.where(pos, s, 0.0), axis=1, keepdims=True)
            denom_acc[...] += jnp.sum(e, axis=1, keepdims=True)
            # sum over positives of logits == invT * (sum_pos(s) - cnt)
            pos_sum_acc[...] += inv_temp * (pos_s - cnt)
            pos_cnt_acc[...] += cnt

        # Only tiles whose row/col ranges overlap the diagonal need the
        # self-pair mask; when B was padded, the last contrast tile also needs
        # a column-validity mask.  All other steps run mask-free.
        diag_hit = jnp.logical_and(q * blk_q < (k + 1) * blk_k,
                                   k * blk_k < (q + 1) * blk_q)
        need_mask = diag_hit
        if needs_pad:
            need_mask = jnp.logical_or(need_mask,
                                       k == pl.num_programs(1) - 1)

        @pl.when(jnp.logical_not(need_mask))
        def _():
            accumulate(None)

        @pl.when(need_mask)
        def _():
            rows = (q * blk_q
                    + lax.broadcasted_iota(jnp.int32, (blk_q, blk_k), 0))
            cols = (k * blk_k
                    + lax.broadcasted_iota(jnp.int32, (blk_q, blk_k), 1))
            keep = rows != cols                      # drop self pairs
            if needs_pad:
                keep = jnp.logical_and(keep, cols < b_real)
            accumulate(keep)

        @pl.when(k == pl.num_programs(1) - 1)
        def _():
            cnt = pos_cnt_acc[...]
            # NaN for an anchor whose class appears only once in the batch --
            # this matches the PyTorch reference (0/0).
            out_ref[...] = (pos_sum_acc[...]
                            - cnt * jnp.log(denom_acc[...])) / cnt

    return kernel


def supcon_loss(features, labels, w1, b1, w2, b2, temperature=0.07,
                use_bf16_exp=None):
    """features: [B, D_in] f32; labels: [B] int; w1: [D_in, H]; w2: [H, D]."""
    B, d_in = features.shape
    d_hid = w1.shape[1]
    d_out = w2.shape[1]
    if use_bf16_exp is None:
        use_bf16_exp = _eup_has_bf16()

    blk_q, blk_k, b_pad = _stage2_blocks(B)

    # Pad the batch once up front to a legal tile multiple.  Padded contrast
    # columns are masked inside the kernel; padded anchor rows are sliced off
    # before the final mean.
    pad = b_pad - B
    feats = features.astype(jnp.float32)
    labels_i32 = labels.astype(jnp.int32)
    if pad:
        feats = jnp.pad(feats, ((0, pad), (0, 0)))
        labels_i32 = jnp.pad(labels_i32, ((0, pad),),
                             constant_values=_PAD_LABEL)

    # bf16 operands for the MXU; biases and all softmax math stay f32.
    x_bf = feats.astype(jnp.bfloat16)
    w1_bf = w1.astype(jnp.bfloat16)
    w2_bf = w2.astype(jnp.bfloat16)
    b1_2d = b1.reshape(1, d_hid).astype(jnp.float32)
    b2_2d = b2.reshape(1, d_out).astype(jnp.float32)

    # ---------------- stage 1: projection head + L2 norm -> z [b_pad, d_out]
    blk_e = _pick_block(b_pad)

    def run_stage1(single_buffer_weights):
        w_mode = ({"pipeline_mode": pl.Buffered(1)}
                  if single_buffer_weights else {})
        return pl.pallas_call(
            _embed_kernel,
            out_shape=jax.ShapeDtypeStruct((b_pad, d_out), jnp.bfloat16),
            grid=(b_pad // blk_e,),
            in_specs=[
                pl.BlockSpec((blk_e, d_in), lambda i: (i, 0)),
                pl.BlockSpec((d_in, d_hid), lambda i: (0, 0), **w_mode),
                pl.BlockSpec((1, d_hid), lambda i: (0, 0), **w_mode),
                pl.BlockSpec((d_hid, d_out), lambda i: (0, 0), **w_mode),
                pl.BlockSpec((1, d_out), lambda i: (0, 0), **w_mode),
            ],
            out_specs=pl.BlockSpec((blk_e, d_out), lambda i: (i, 0)),
            compiler_params=pltpu.CompilerParams(
                dimension_semantics=("parallel",),
                vmem_limit_bytes=_VMEM_LIMIT_BYTES),
        )(x_bf, w1_bf, b1_2d, w2_bf, b2_2d)

    try:
        # Weights have constant index maps: keep a single resident copy.
        z = run_stage1(True)
    except Exception:  # fallback if this jax rejects Buffered(1) specs
        z = run_stage1(False)

    # -------- stage 2: streamed SupCon loss over (anchor, contrast) tiles ---
    labels_col = labels_i32.reshape(b_pad, 1)   # anchor labels
    labels_row = labels_i32.reshape(1, b_pad)   # contrast labels (no xpose)

    n_q = b_pad // blk_q
    n_k = b_pad // blk_k
    cost = pl.CostEstimate(
        flops=2 * b_pad * b_pad * d_out,
        transcendentals=b_pad * b_pad,
        bytes_accessed=(n_k * b_pad * d_out * 2     # anchor z re-read per k
                        + n_q * b_pad * d_out * 2   # contrast z re-read per q
                        + b_pad * 4 + 2 * b_pad * 4))

    mean_log_prob_pos = pl.pallas_call(
        _make_loss_kernel(1.0 / float(temperature), blk_q, blk_k,
                          B, b_pad, use_bf16_exp),
        out_shape=jax.ShapeDtypeStruct((b_pad, 1), jnp.float32),
        grid=(n_q, n_k),
        in_specs=[
            pl.BlockSpec((blk_q, d_out), lambda q, k: (q, 0)),   # anchor z
            pl.BlockSpec((blk_k, d_out), lambda q, k: (k, 0)),   # contrast z
            pl.BlockSpec((blk_q, 1), lambda q, k: (q, 0)),       # anchor lab
            pl.BlockSpec((1, blk_k), lambda q, k: (0, k)),       # contrast lab
        ],
        out_specs=pl.BlockSpec((blk_q, 1), lambda q, k: (q, 0)),
        scratch_shapes=[
            pltpu.VMEM((blk_q, 1), jnp.float32),   # sum exp(logits)  (denom)
            pltpu.VMEM((blk_q, 1), jnp.float32),   # sum of positive logits
            pltpu.VMEM((blk_q, 1), jnp.float32),   # positive count
        ],
        compiler_params=pltpu.CompilerParams(
            dimension_semantics=("parallel", "arbitrary"),
            vmem_limit_bytes=_VMEM_LIMIT_BYTES),
        cost_estimate=cost,
    )(z, z, labels_col, labels_row)

    # Drop padded anchors; trivial final reduce stays in JAX so the anchor
    # grid axis remains "parallel" across TensorCores.
    return -jnp.mean(mean_log_prob_pos[:B, 0])


def _reference_loss(features, labels, w1, b1, w2, b2, temperature=0.07):
    """Pure-JAX f32 reference mirroring the PyTorch forward."""
    h = jnp.maximum(features @ w1 + b1, 0.0)
    z = h @ w2 + b2
    z = z / jnp.sqrt(jnp.sum(z * z, axis=1, keepdims=True))
    z = z / jnp.sqrt(jnp.sum(z * z, axis=1, keepdims=True))
    B = z.shape[0]
    lab = labels.reshape(-1, 1)
    mask = (lab == lab.T).astype(jnp.float32)
    adc = (z @ z.T) / temperature
    logits = adc - jnp.max(adc, axis=1, keepdims=True)
    logits_mask = 1.0 - jnp.eye(B, dtype=jnp.float32)
    mask = mask * logits_mask
    exp_logits = jnp.exp(logits) * logits_mask
    log_prob = logits - jnp.log(jnp.sum(exp_logits, axis=1, keepdims=True))
    mean_log_prob_pos = jnp.sum(mask * log_prob, axis=1) / jnp.sum(mask, axis=1)
    return -jnp.mean(mean_log_prob_pos)


if __name__ == "__main__":
    B, D_IN, D_OUT = 8, 64, 128
    key = jax.random.PRNGKey(0)
    k_feat, k_w1, k_b1, k_w2, k_b2 = jax.random.split(key, 5)

    features = jax.random.normal(k_feat, (B, D_IN), dtype=jnp.float32)
    # each class appears twice so every anchor has at least one positive
    labels = jnp.array([0, 0, 1, 1, 2, 2, 3, 3], dtype=jnp.int32)

    # deterministic Linear-style init (uniform(-1/sqrt(fan_in), 1/sqrt(fan_in)))
    lim1 = 1.0 / jnp.sqrt(jnp.float32(D_IN))
    lim2 = 1.0 / jnp.sqrt(jnp.float32(D_OUT))
    w1 = jax.random.uniform(k_w1, (D_IN, D_OUT), jnp.float32, -lim1, lim1)
    b1 = jax.random.uniform(k_b1, (D_OUT,), jnp.float32, -lim1, lim1)
    w2 = jax.random.uniform(k_w2, (D_OUT, D_OUT), jnp.float32, -lim2, lim2)
    b2 = jax.random.uniform(k_b2, (D_OUT,), jnp.float32, -lim2, lim2)

    loss = supcon_loss(features, labels, w1, b1, w2, b2, temperature=0.07)
    loss = jax.block_until_ready(loss)

    ref = jax.block_until_ready(
        _reference_loss(features, labels, w1, b1, w2, b2, temperature=0.07)
    )
    assert jnp.isfinite(loss), "loss is not finite"
    # bf16 MXU operands (+ bf16 exponentials on v6e/v7x) vs f32 reference.
    assert jnp.allclose(loss, ref, rtol=4e-2, atol=4e-2), (loss, ref)

    print("KERNEL_OK")
</pallas_src>

<mosaic_0001>
module attributes {stable_mosaic.version = 11 : i64} {
  func.func @_embed_kernel(%arg0: i32, %arg1: memref<8x64xbf16, #tpu.memory_space<vmem>>, %arg2: memref<64x128xbf16, #tpu.memory_space<vmem>>, %arg3: memref<1x128xf32, #tpu.memory_space<vmem>>, %arg4: memref<128x128xbf16, #tpu.memory_space<vmem>>, %arg5: memref<1x128xf32, #tpu.memory_space<vmem>>, %arg6: memref<8x128xbf16, #tpu.memory_space<vmem>>) attributes {dimension_semantics = [#tpu.dimension_semantics<parallel>], iteration_bounds = array<i64: 1>, scalar_prefetch = 0 : i64, scratch_operands = 0 : i64, tpu.core_type = #tpu.core_type<tc>, window_params = [{transform_indices = @transform_0, window_bounds = array<i64: 8, 64>}, {pipeline_mode = #tpu.pipeline_mode<synchronous>, transform_indices = @transform_1, window_bounds = array<i64: 64, 128>}, {pipeline_mode = #tpu.pipeline_mode<synchronous>, transform_indices = @transform_2, window_bounds = array<i64: 1, 128>}, {pipeline_mode = #tpu.pipeline_mode<synchronous>, transform_indices = @transform_3, window_bounds = array<i64: 128, 128>}, {pipeline_mode = #tpu.pipeline_mode<synchronous>, transform_indices = @transform_4, window_bounds = array<i64: 1, 128>}, {transform_indices = @transform_5, window_bounds = array<i64: 8, 128>}]} {
    %c0 = arith.constant 0 : index
    %c0_0 = arith.constant 0 : index
    %0 = vector.load %arg1[%c0, %c0_0] : memref<8x64xbf16, #tpu.memory_space<vmem>>, vector<8x64xbf16>
    %c0_1 = arith.constant 0 : index
    %c0_2 = arith.constant 0 : index
    %1 = vector.load %arg2[%c0_1, %c0_2] : memref<64x128xbf16, #tpu.memory_space<vmem>>, vector<64x128xbf16>
    %cst = arith.constant dense<0.000000e+00> : vector<8x128xf32>
    %2 = tpu.matmul %0, %1, %cst {dimension_numbers = #tpu.dot_dimension_numbers<[1], [0], [0], [1], [0, 0, 1, 1], [], []>} : vector<8x64xbf16>, vector<64x128xbf16>, vector<8x128xf32> -> vector<8x128xf32>
    %c0_3 = arith.constant 0 : index
    %c0_4 = arith.constant 0 : index
    %3 = vector.load %arg3[%c0_3, %c0_4] : memref<1x128xf32, #tpu.memory_space<vmem>>, vector<1x128xf32>
    %4 = vector.broadcast %3 : vector<1x128xf32> to vector<8x128xf32>
    %5 = arith.addf %2, %4 : vector<8x128xf32>
    %cst_5 = arith.constant 0.000000e+00 : f32
    %6 = vector.broadcast %cst_5 : f32 to vector<8x128xf32>
    %7 = arith.maximumf %5, %6 : vector<8x128xf32>
    %8 = arith.truncf %7 : vector<8x128xf32> to vector<8x128xbf16>
    %c0_6 = arith.constant 0 : index
    %c0_7 = arith.constant 0 : index
    %9 = vector.load %arg4[%c0_6, %c0_7] : memref<128x128xbf16, #tpu.memory_space<vmem>>, vector<128x128xbf16>
    %cst_8 = arith.constant dense<0.000000e+00> : vector<8x128xf32>
    %10 = tpu.matmul %8, %9, %cst_8 {dimension_numbers = #tpu.dot_dimension_numbers<[1], [0], [0], [1], [0, 0, 1, 1], [], []>} : vector<8x128xbf16>, vector<128x128xbf16>, vector<8x128xf32> -> vector<8x128xf32>
    %c0_9 = arith.constant 0 : index
    %c0_10 = arith.constant 0 : index
    %11 = vector.load %arg5[%c0_9, %c0_10] : memref<1x128xf32, #tpu.memory_space<vmem>>, vector<1x128xf32>
    %12 = vector.broadcast %11 : vector<1x128xf32> to vector<8x128xf32>
    %13 = arith.addf %10, %12 : vector<8x128xf32>
    %14 = arith.mulf %13, %13 : vector<8x128xf32>
    %cst_11 = arith.constant dense<0.000000e+00> : vector<8xf32>
    %15 = vector.multi_reduction <add>, %14, %cst_11 [1] : vector<8x128xf32> to vector<8xf32>
    %16 = vector.shape_cast %15 : vector<8xf32> to vector<8x1xf32>
    %17 = math.rsqrt %16 : vector<8x1xf32>
    %18 = vector.broadcast %17 : vector<8x1xf32> to vector<8x128xf32>
    %19 = arith.mulf %13, %18 : vector<8x128xf32>
    %20 = arith.truncf %19 : vector<8x128xf32> to vector<8x128xbf16>
    %c0_12 = arith.constant 0 : index
    %c0_13 = arith.constant 0 : index
    %21 = vector.load %arg6[%c0_12, %c0_13] : memref<8x128xbf16, #tpu.memory_space<vmem>>, vector<8x128xbf16>
    tpu.vector_store %arg6[%c0_12, %c0_13], %20 {strides = array<i32>} : memref<8x128xbf16, #tpu.memory_space<vmem>>, vector<8x128xbf16>,
    return
  }
  func.func @transform_0(%arg0: i32) -> (i32, i32) {
    %c0_i32 = arith.constant 0 : i32
    %c0_i32_0 = arith.constant 0 : i32
    return %arg0, %c0_i32 : i32, i32
  }
  func.func @transform_1(%arg0: i32) -> (i32, i32) {
    %c0_i32 = arith.constant 0 : i32
    %c0_i32_0 = arith.constant 0 : i32
    %c0_i32_1 = arith.constant 0 : i32
    return %c0_i32, %c0_i32_0 : i32, i32
  }
  func.func @transform_2(%arg0: i32) -> (i32, i32) {
    %c0_i32 = arith.constant 0 : i32
    %c0_i32_0 = arith.constant 0 : i32
    %c0_i32_1 = arith.constant 0 : i32
    return %c0_i32, %c0_i32_0 : i32, i32
  }
  func.func @transform_3(%arg0: i32) -> (i32, i32) {
    %c0_i32 = arith.constant 0 : i32
    %c0_i32_0 = arith.constant 0 : i32
    %c0_i32_1 = arith.constant 0 : i32
    return %c0_i32, %c0_i32_0 : i32, i32
  }
  func.func @transform_4(%arg0: i32) -> (i32, i32) {
    %c0_i32 = arith.constant 0 : i32
    %c0_i32_0 = arith.constant 0 : i32
    %c0_i32_1 = arith.constant 0 : i32
    return %c0_i32, %c0_i32_0 : i32, i32
  }
  func.func @transform_5(%arg0: i32) -> (i32, i32) {
    %c0_i32 = arith.constant 0 : i32
    %c0_i32_0 = arith.constant 0 : i32
    return %arg0, %c0_i32 : i32, i32
  }
}

module attributes {stable_mosaic.version = 11 : i64} {
  func.func @_embed_kernel(%arg0: i32, %arg1: memref<8x64xbf16, #tpu.memory_space<vmem>>, %arg2: memref<64x128xbf16, #tpu.memory_space<vmem>>, %arg3: memref<1x128xf32, #tpu.memory_space<vmem>>, %arg4: memref<128x128xbf16, #tpu.memory_space<vmem>>, %arg5: memref<1x128xf32, #tpu.memory_space<vmem>>, %arg6: memref<8x128xbf16, #tpu.memory_space<vmem>>) attributes {dimension_semantics = [#tpu.dimension_semantics<parallel>], iteration_bounds = array<i64: 1>, scalar_prefetch = 0 : i64, scratch_operands = 0 : i64, tpu.core_type = #tpu.core_type<tc>, window_params = [{transform_indices = @transform_0, window_bounds = array<i64: 8, 64>}, {pipeline_mode = #tpu.pipeline_mode<synchronous>, transform_indices = @transform_1, window_bounds = array<i64: 64, 128>}, {pipeline_mode = #tpu.pipeline_mode<synchronous>, transform_indices = @transform_2, window_bounds = array<i64: 1, 128>}, {pipeline_mode = #tpu.pipeline_mode<synchronous>, transform_indices = @transform_3, window_bounds = array<i64: 128, 128>}, {pipeline_mode = #tpu.pipeline_mode<synchronous>, transform_indices = @transform_4, window_bounds = array<i64: 1, 128>}, {transform_indices = @transform_5, window_bounds = array<i64: 8, 128>}]} {
    %c0 = arith.constant 0 : index
    %c0_0 = arith.constant 0 : index
    %0 = vector.load %arg1[%c0, %c0_0] : memref<8x64xbf16, #tpu.memory_space<vmem>>, vector<8x64xbf16>
    %c0_1 = arith.constant 0 : index
    %c0_2 = arith.constant 0 : index
    %1 = vector.load %arg2[%c0_1, %c0_2] : memref<64x128xbf16, #tpu.memory_space<vmem>>, vector<64x128xbf16>
    %cst = arith.constant dense<0.000000e+00> : vector<8x128xf32>
    %2 = tpu.matmul %0, %1, %cst {dimension_numbers = #tpu.dot_dimension_numbers<[1], [0], [0], [1], [0, 0, 1, 1], [], []>} : vector<8x64xbf16>, vector<64x128xbf16>, vector<8x128xf32> -> vector<8x128xf32>
    %c0_3 = arith.constant 0 : index
    %c0_4 = arith.constant 0 : index
    %3 = vector.load %arg3[%c0_3, %c0_4] : memref<1x128xf32, #tpu.memory_space<vmem>>, vector<1x128xf32>
    %4 = vector.broadcast %3 : vector<1x128xf32> to vector<8x128xf32>
    %5 = arith.addf %2, %4 : vector<8x128xf32>
    %cst_5 = arith.constant 0.000000e+00 : f32
    %6 = vector.broadcast %cst_5 : f32 to vector<8x128xf32>
    %7 = arith.maximumf %5, %6 : vector<8x128xf32>
    %8 = arith.truncf %7 : vector<8x128xf32> to vector<8x128xbf16>
    %c0_6 = arith.constant 0 : index
    %c0_7 = arith.constant 0 : index
    %9 = vector.load %arg4[%c0_6, %c0_7] : memref<128x128xbf16, #tpu.memory_space<vmem>>, vector<128x128xbf16>
    %cst_8 = arith.constant dense<0.000000e+00> : vector<8x128xf32>
    %10 = tpu.matmul %8, %9, %cst_8 {dimension_numbers = #tpu.dot_dimension_numbers<[1], [0], [0], [1], [0, 0, 1, 1], [], []>} : vector<8x128xbf16>, vector<128x128xbf16>, vector<8x128xf32> -> vector<8x128xf32>
    %c0_9 = arith.constant 0 : index
    %c0_10 = arith.constant 0 : index
    %11 = vector.load %arg5[%c0_9, %c0_10] : memref<1x128xf32, #tpu.memory_space<vmem>>, vector<1x128xf32>
    %12 = vector.broadcast %11 : vector<1x128xf32> to vector<8x128xf32>
    %13 = arith.addf %10, %12 : vector<8x128xf32>
    %14 = arith.mulf %13, %13 : vector<8x128xf32>
    %cst_11 = arith.constant dense<0.000000e+00> : vector<8xf32>
    %15 = vector.multi_reduction <add>, %14, %cst_11 [1] : vector<8x128xf32> to vector<8xf32>
    %16 = vector.shape_cast %15 : vector<8xf32> to vector<8x1xf32>
    %17 = math.rsqrt %16 : vector<8x1xf32>
    %18 = vector.broadcast %17 : vector<8x1xf32> to vector<8x128xf32>
    %19 = arith.mulf %13, %18 : vector<8x128xf32>
    %20 = arith.truncf %19 : vector<8x128xf32> to vector<8x128xbf16>
    %c0_12 = arith.constant 0 : index
    %c0_13 = arith.constant 0 : index
    %21 = vector.load %arg6[%c0_12, %c0_13] : memref<8x128xbf16, #tpu.memory_space<vmem>>, vector<8x128xbf16>
    tpu.vector_store %arg6[%c0_12, %c0_13], %20 {strides = array<i32>} : memref<8x128xbf16, #tpu.memory_space<vmem>>, vector<8x128xbf16>,
    return
  }
  func.func @transform_0(%arg0: i32) -> (i32, i32) {
    %c0_i32 = arith.constant 0 : i32
    %c0_i32_0 = arith.constant 0 : i32
    return %arg0, %c0_i32 : i32, i32
  }
  func.func @transform_1(%arg0: i32) -> (i32, i32) {
    %c0_i32 = arith.constant 0 : i32
    %c0_i32_0 = arith.constant 0 : i32
    %c0_i32_1 = arith.constant 0 : i32
    return %c0_i32, %c0_i32_0 : i32, i32
  }
  func.func @transform_2(%arg0: i32) -> (i32, i32) {
    %c0_i32 = arith.constant 0 : i32
    %c0_i32_0 = arith.constant 0 : i32
    %c0_i32_1 = arith.constant 0 : i32
    return %c0_i32, %c0_i32_0 : i32, i32
  }
  func.func @transform_3(%arg0: i32) -> (i32, i32) {
    %c0_i32 = arith.constant 0 : i32
    %c0_i32_0 = arith.constant 0 : i32
    %c0_i32_1 = arith.constant 0 : i32
    return %c0_i32, %c0_i32_0 : i32, i32
  }
  func.func @transform_4(%arg0: i32) -> (i32, i32) {
    %c0_i32 = arith.constant 0 : i32
    %c0_i32_0 = arith.constant 0 : i32
    %c0_i32_1 = arith.constant 0 : i32
    return %c0_i32, %c0_i32_0 : i32, i32
  }
  func.func @transform_5(%arg0: i32) -> (i32, i32) {
    %c0_i32 = arith.constant 0 : i32
    %c0_i32_0 = arith.constant 0 : i32
    return %arg0, %c0_i32 : i32, i32
  }
}

</mosaic_0001>

<llo_original>
// kernel: tpu_custom_call.1
$region0: #{tpu_custom_call.1}
  #allocation0 [shape = 'u32[]', space=smem, size = 0x4, offset = 0x4, fixed_abs, tag = 'smem constant byte address 0x4 - core index']
  #allocation1 [shape = 'u32[144,128]{1,0:T(1,128)}', space=vmem, size = 0x12000, scoped, tag = 'internal scratch']
  %s0 = inlined_call_operand.hbm [shape: bf16[8,64], index: 0, kind: input, shape index: {}]
  %s1 = inlined_call_operand.hbm [shape: bf16[64,128], index: 1, kind: input, shape index: {}]
  %s2 = inlined_call_operand.vmem [shape: f32[1,128], index: 2, kind: input, shape index: {}]
  %s3 = inlined_call_operand.hbm [shape: bf16[128,128], index: 3, kind: input, shape index: {}]
  %s4 = inlined_call_operand.vmem [shape: f32[1,128], index: 4, kind: input, shape index: {}]
  %s5 = inlined_call_operand.hbm [shape: bf16[8,128], index: 5, kind: output, shape index: {}]
  %s6 = sld [smem:[#allocation0]]
  $region42: #{tpu_custom_call.1} parent=0
    _
  %s8 = ssub.s32 1, %s6
  %s9 = scalar_select 0, %s8, %s6
  $region1: #{tpu_custom_call.1} parent=0
    #allocation2 [shape = 'u8[2048]{0}', space=vmem, size = 0x800, scoped, tag = 'input window, operand 0, single buffered']
    #allocation3 [shape = 's32[1]{0}', space=sflag, size = 0x4, scoped, tag = 'scoped memory for tpu_custom_call.1']
    #allocation4 [shape = 's32[1]{0}', space=sflag, size = 0x4, scoped, tag = 'scoped memory for tpu_custom_call.1']
    #allocation5 [shape = 'u8[16384]{0}', space=vmem, size = 0x4000, scoped, tag = 'input window, operand 1, single buffered']
    #allocation6 [shape = 's32[1]{0}', space=sflag, size = 0x4, scoped, tag = 'scoped memory for tpu_custom_call.1']
    #allocation7 [shape = 'u8[32768]{0}', space=vmem, size = 0x8000, scoped, tag = 'input window, operand 3, single buffered']
    #allocation8 [shape = 'u8[2048]{0}', space=vmem, size = 0x800, scoped, tag = 'output window, operand 0, single buffered']
    %10 = vsyncpa [#allocation3], 0
    %11 = vsyncpa [#allocation6], 0
    %12 = vsyncpa [#allocation4], 0
    // Predicated region
    $region2: #{tpu_custom_call.1} parent=1 // pred_check
      _
    $region3: #{tpu_custom_call.1} parent=1 // pred_check_branch
      %14 = sbr.rel (0) target = $region5
    $region4: #{tpu_custom_call.1} parent=1 // pred_region
      %s16 = ssub.s32 64, 64
      %17 = vsyncadd [#allocation3], %s16
      %s19 = sshll.u32 [#allocation2], 4
      %s20 = int_to_ptr.vmem [resolvable:$true] %s19
      %22 = dma.hbm_to_vmem [thread:$0]  %s0, 64, %s20, [#allocation3]
    $region5: #{tpu_custom_call.1} parent=1 // pred_fallthru
      _
    // Predicated region
    $region6: #{tpu_custom_call.1} parent=1 // pred_check
      _
    $region7: #{tpu_custom_call.1} parent=1 // pred_check_branch
      %24 = sbr.rel (0) target = $region9
    $region8: #{tpu_custom_call.1} parent=1 // pred_region
      %s26 = ssub.s32 512, 512
      %27 = vsyncadd [#allocation6], %s26
      %s28 = sshll.u32 [#allocation5], 4
      %s29 = int_to_ptr.vmem [resolvable:$true] %s28
      %34 = dma.hbm_to_vmem [thread:$0]  %s1, 512, %s29, [#allocation6], 64, 64, 4
    $region9: #{tpu_custom_call.1} parent=1 // pred_fallthru
      _
    // Predicated region
    $region10: #{tpu_custom_call.1} parent=1 // pred_check
      _
    $region11: #{tpu_custom_call.1} parent=1 // pred_check_branch
      %36 = sbr.rel (0) target = $region13
    $region12: #{tpu_custom_call.1} parent=1 // pred_region
      _
    $region13: #{tpu_custom_call.1} parent=1 // pred_fallthru
      _
    // Predicated region
    $region14: #{tpu_custom_call.1} parent=1 // pred_check
      _
    $region15: #{tpu_custom_call.1} parent=1 // pred_check_branch
      %38 = sbr.rel (0) target = $region17
    $region16: #{tpu_custom_call.1} parent=1 // pred_region
      %s40 = ssub.s32 1024, 1024
      %41 = vsyncadd [#allocation6], %s40
      %s42 = sshll.u32 [#allocation7], 4
      %s43 = int_to_ptr.vmem [resolvable:$true] %s42
      %48 = dma.hbm_to_vmem [thread:$0]  %s3, 1024, %s43, [#allocation6], 64, 64, 4
    $region17: #{tpu_custom_call.1} parent=1 // pred_fallthru
      _
    // Predicated region
    $region18: #{tpu_custom_call.1} parent=1 // pred_check
      _
    $region19: #{tpu_custom_call.1} parent=1 // pred_check_branch
      %50 = sbr.rel (0) target = $region21
    $region20: #{tpu_custom_call.1} parent=1 // pred_region
      _
    $region21: #{tpu_custom_call.1} parent=1 // pred_fallthru
      _
    // Predicated region
    $region22: #{tpu_custom_call.1} parent=1 // pred_check
      _
    $region23: #{tpu_custom_call.1} parent=1 // pred_check_branch
      %52 = sbr.rel (0) target = $region25
    $region24: #{tpu_custom_call.1} parent=1 // pred_region
      %53 = dma.done [#allocation3], 64
    $region25: #{tpu_custom_call.1} parent=1 // pred_fallthru
      _
    // Predicated region
    $region26: #{tpu_custom_call.1} parent=1 // pred_check
      _
    $region27: #{tpu_custom_call.1} parent=1 // pred_check_branch
      %55 = sbr.rel (0) target = $region29
    $region28: #{tpu_custom_call.1} parent=1 // pred_region
      %56 = dma.done [#allocation6], 512
    $region29: #{tpu_custom_call.1} parent=1 // pred_fallthru
      _
    // Predicated region
    $region30: #{tpu_custom_call.1} parent=1 // pred_check
      _
    $region31: #{tpu_custom_call.1} parent=1 // pred_check_branch
      %58 = sbr.rel (0) target = $region33
    $region32: #{tpu_custom_call.1} parent=1 // pred_region
      %59 = dma.done [#allocation6], 1024
    $region33: #{tpu_custom_call.1} parent=1 // pred_fallthru
      _
    %v61 = vld [vmem:[#allocation2] sm:$0xf]
    %v62 = vld [vmem:[#allocation5] sm:$0xf]
    %v63 = vld [vmem:[#allocation5 + $0x4] sm:$0xf]
    %v64 = vld [vmem:[#allocation5 + $0x8] sm:$0xf]
    %v65 = vld [vmem:[#allocation5 + $0xc] sm:$0xf]
    %v66 = vld [vmem:[#allocation5 + $0x10] sm:$0xf]
    %v67 = vld [vmem:[#allocation5 + $0x14] sm:$0xf]
    %v68 = vld [vmem:[#allocation5 + $0x18] sm:$0xf]
    %v69 = vld [vmem:[#allocation5 + $0x1c] sm:$0xf]
    %v70 = vld [vmem:[%s2] sm:$0x1]
    %v72 = vlaneseq
    %v73 = vshrl.u32 %v72, 7
    %v74 = vsub.s32 0, %v73
    %v75 = vrot.slane %v70, %v74
    %v85 = vunpack.c.l.b16 %v62
    %v86 = vunpack.c.l.b16 %v63
    %v87 = vunpack.c.l.b16 %v64
    %v88 = vunpack.c.l.b16 %v65
    %v89 = vunpack.c.l.b16 %v66
    %v90 = vunpack.c.l.b16 %v67
    %v91 = vunpack.c.l.b16 %v68
    %v92 = vunpack.c.l.b16 %v69
    %v93 = vpack.c.b16 %v86, %v85
    %v94 = vpack.c.b16 %v88, %v87
    %v95 = vpack.c.b16 %v90, %v89
    %v96 = vpack.c.b16 %v92, %v91
    %vm101 = vcmask 523264
    %v103 = vsel %vm101, %v61, 0
    %105 = vmatprep.subr.bf16.mxu0 0
    %106 = vmatpush1.bf16.msra.mxu0 %v93
    %107 = vmatprep.subr.bf16.mxu0 0
    %108 = vmatpush1.bf16.msra.mxu0 %v94
    %109 = vmatprep.subr.bf16.mxu0 0
    %110 = vmatpush1.bf16.msra.mxu0 %v95
    %111 = vmatprep.subr.bf16.mxu0 0
    %112 = vmatpush1.bf16.msra.mxu0 %v96
    %113 = vmatprep.subr.bf16.mxu0 0
    %114 = vmatpush1.bf16.msra.mxu0 0
    %115 = vmatprep.subr.bf16.mxu0 0
    %116 = vmatpush1.bf16.msra.mxu0 0
    %117 = vmatprep.subr.bf16.mxu0 0
    %118 = vmatpush1.bf16.msra.mxu0 0
    %119 = vmatprep.subr.bf16.mxu0 0
    %120 = vmatpush1.bf16.msra.mxu0 0
    %121 = vmatprep.subr.bf16.mxu0 0
    %122 = vmatpush1.bf16.msra.mxu0 0
    %123 = vmatprep.subr.bf16.mxu0 0
    %124 = vmatpush1.bf16.msra.mxu0 0
    %125 = vmatprep.subr.bf16.mxu0 0
    %126 = vmatpush1.bf16.msra.mxu0 0
    %127 = vmatprep.subr.bf16.mxu0 0
    %128 = vmatpush1.bf16.msra.mxu0 0
    %129 = vmatprep.subr.bf16.mxu0 0
    %130 = vmatpush1.bf16.msra.mxu0 0
    %131 = vmatprep.subr.bf16.mxu0 0
    %132 = vmatpush1.bf16.msra.mxu0 0
    %133 = vmatprep.subr.bf16.mxu0 0
    %134 = vmatpush1.bf16.msra.mxu0 0
    %135 = vmatprep.subr.bf16.mxu0 0
    %136 = vmatpush1.bf16.msra.mxu0 0
    %137 = vmatprep.mubr.bf16.mxu0 0
    %138 = vmatmul.mubr.bf16.gmra.mrb[0].mxu0 %v103
    %v139 = vpop.f32.mrb[0].mxu0
    %v140 = vadd.f32 %v75, %v139
    %v141 = vpop.f32.mrb[0].mxu0
    %v142 = vpop.f32.mrb[0].mxu0
    %v143 = vpop.f32.mrb[0].mxu0
    %144 = vdwg.mxu0
    %v145 = vmax.f32 %v140, 0.0
    %v146 = vpack.c.bf16 %v145, %v145
    %v147 = vld [vmem:[#allocation7] sm:$0xf]
    %v148 = vld [vmem:[#allocation7 + $0x4] sm:$0xf]
    %v149 = vld [vmem:[#allocation7 + $0x8] sm:$0xf]
    %v150 = vld [vmem:[#allocation7 + $0xc] sm:$0xf]
    %v151 = vld [vmem:[#allocation7 + $0x10] sm:$0xf]
    %v152 = vld [vmem:[#allocation7 + $0x14] sm:$0xf]
    %v153 = vld [vmem:[#allocation7 + $0x18] sm:$0xf]
    %v154 = vld [vmem:[#allocation7 + $0x1c] sm:$0xf]
    %v155 = vld [vmem:[#allocation7 + $0x20] sm:$0xf]
    %v156 = vld [vmem:[#allocation7 + $0x24] sm:$0xf]
    %v157 = vld [vmem:[#allocation7 + $0x28] sm:$0xf]
    %v158 = vld [vmem:[#allocation7 + $0x2c] sm:$0xf]
    %v159 = vld [vmem:[#allocation7 + $0x30] sm:$0xf]
    %v160 = vld [vmem:[#allocation7 + $0x34] sm:$0xf]
    %v161 = vld [vmem:[#allocation7 + $0x38] sm:$0xf]
    %v162 = vld [vmem:[#allocation7 + $0x3c] sm:$0xf]
    %v163 = vld [vmem:[%s4] sm:$0x1]
    %v165 = vlaneseq
    %v166 = vshrl.u32 %v165, 7
    %v167 = vsub.s32 0, %v166
    %v168 = vrot.slane %v163, %v167
    %v186 = vunpack.c.l.b16 %v147
    %v187 = vunpack.c.l.b16 %v148
    %v188 = vunpack.c.l.b16 %v149
    %v189 = vunpack.c.l.b16 %v150
    %v190 = vunpack.c.l.b16 %v151
    %v191 = vunpack.c.l.b16 %v152
    %v192 = vunpack.c.l.b16 %v153
    %v193 = vunpack.c.l.b16 %v154
    %v194 = vunpack.c.l.b16 %v155
    %v195 = vunpack.c.l.b16 %v156
    %v196 = vunpack.c.l.b16 %v157
    %v197 = vunpack.c.l.b16 %v158
    %v198 = vunpack.c.l.b16 %v159
    %v199 = vunpack.c.l.b16 %v160
    %v200 = vunpack.c.l.b16 %v161
    %v201 = vunpack.c.l.b16 %v162
    %v202 = vpack.c.b16 %v187, %v186
    %v203 = vpack.c.b16 %v189, %v188
    %v204 = vpack.c.b16 %v191, %v190
    %v205 = vpack.c.b16 %v193, %v192
    %v206 = vpack.c.b16 %v195, %v194
    %v207 = vpack.c.b16 %v197, %v196
    %v208 = vpack.c.b16 %v199, %v198
    %v209 = vpack.c.b16 %v201, %v200
    %218 = vmatprep.subr.bf16.mxu0 0
    %219 = vmatpush1.bf16.msra.mxu0 %v202
    %220 = vmatprep.subr.bf16.mxu0 0
    %221 = vmatpush1.bf16.msra.mxu0 %v203
    %222 = vmatprep.subr.bf16.mxu0 0
    %223 = vmatpush1.bf16.msra.mxu0 %v204
    %224 = vmatprep.subr.bf16.mxu0 0
    %225 = vmatpush1.bf16.msra.mxu0 %v205
    %226 = vmatprep.subr.bf16.mxu0 0
    %227 = vmatpush1.bf16.msra.mxu0 %v206
    %228 = vmatprep.subr.bf16.mxu0 0
    %229 = vmatpush1.bf16.msra.mxu0 %v207
    %230 = vmatprep.subr.bf16.mxu0 0
    %231 = vmatpush1.bf16.msra.mxu0 %v208
    %232 = vmatprep.subr.bf16.mxu0 0
    %233 = vmatpush1.bf16.msra.mxu0 %v209
    %234 = vmatprep.subr.bf16.mxu0 0
    %235 = vmatpush1.bf16.msra.mxu0 0
    %236 = vmatprep.subr.bf16.mxu0 0
    %237 = vmatpush1.bf16.msra.mxu0 0
    %238 = vmatprep.subr.bf16.mxu0 0
    %239 = vmatpush1.bf16.msra.mxu0 0
    %240 = vmatprep.subr.bf16.mxu0 0
    %241 = vmatpush1.bf16.msra.mxu0 0
    %242 = vmatprep.subr.bf16.mxu0 0
    %243 = vmatpush1.bf16.msra.mxu0 0
    %244 = vmatprep.subr.bf16.mxu0 0
    %245 = vmatpush1.bf16.msra.mxu0 0
    %246 = vmatprep.subr.bf16.mxu0 0
    %247 = vmatpush1.bf16.msra.mxu0 0
    %248 = vmatprep.subr.bf16.mxu0 0
    %249 = vmatpush1.bf16.msra.mxu0 0
    %250 = vmatprep.mubr.bf16.mxu0 0
    %251 = vmatmul.mubr.bf16.gmra.mrb[0].mxu0 %v146
    %v252 = vpop.f32.mrb[0].mxu0
    %v253 = vadd.f32 %v168, %v252
    %v254 = vpop.f32.mrb[0].mxu0
    %v255 = vpop.f32.mrb[0].mxu0
    %v256 = vpop.f32.mrb[0].mxu0
    %257 = vdwg.mxu0
    %v258 = vmul.f32 %v253, %v253
    %259 = vadd.xlane.f32.xlu0 %v258
    %v260 = vpop.xlane.xlu0 %259
    %v261 = vrsqrt.pop %v260
    %v262 = vmul.f32 %v253, %v261
    %v263 = vpack.c.bf16 %v262, %v262
    %264 = vst [vmem:[#allocation8] sm:$0xf] %v263
    // Predicated region
    $region34: #{tpu_custom_call.1} parent=1 // pred_check
      _
    $region35: #{tpu_custom_call.1} parent=1 // pred_check_branch
      %266 = sbr.rel (0) target = $region37
    $region36: #{tpu_custom_call.1} parent=1 // pred_region
      %s268 = ssub.s32 64, 64
      %269 = vsyncadd [#allocation4], %s268
      %s271 = sshll.u32 [#allocation8], 4
      %s272 = int_to_ptr.vmem [resolvable:$true] %s271
      %274 = dma.vmem_to_hbm [thread:$0]  %s272, 64, %s5, [#allocation4]
    $region37: #{tpu_custom_call.1} parent=1 // pred_fallthru
      _
    // Predicated region
    $region38: #{tpu_custom_call.1} parent=1 // pred_check
      _
    $region39: #{tpu_custom_call.1} parent=1 // pred_check_branch
      %276 = sbr.rel (0) target = $region41
    $region40: #{tpu_custom_call.1} parent=1 // pred_region
      %277 = dma.done [#allocation4], 64
    $region41: #{tpu_custom_call.1} parent=1 // pred_fallthru
      _
    %278 = vsyncpa [#allocation3], 1
    %279 = vsyncpa [#allocation6], 1
    %280 = vsyncpa [#allocation4], 1

// kernel: tpu_custom_call.1
$region0: #{tpu_custom_call.1}
  #allocation0 [shape = 'u32[]', space=smem, size = 0x4, offset = 0x4, fixed_abs, tag = 'smem constant byte address 0x4 - core index']
  #allocation1 [shape = 'u32[144,128]{1,0:T(1,128)}', space=vmem, size = 0x12000, scoped, tag = 'internal scratch']
  %s0 = inlined_call_operand.hbm [shape: bf16[8,64], index: 0, kind: input, shape index: {}]
  %s1 = inlined_call_operand.hbm [shape: bf16[64,128], index: 1, kind: input, shape index: {}]
  %s2 = inlined_call_operand.vmem [shape: f32[1,128], index: 2, kind: input, shape index: {}]
  %s3 = inlined_call_operand.hbm [shape: bf16[128,128], index: 3, kind: input, shape index: {}]
  %s4 = inlined_call_operand.vmem [shape: f32[1,128], index: 4, kind: input, shape index: {}]
  %s5 = inlined_call_operand.hbm [shape: bf16[8,128], index: 5, kind: output, shape index: {}]
  %s6 = sld [smem:[#allocation0]]
  $region42: #{tpu_custom_call.1} parent=0
    _
  %s8 = ssub.s32 1, %s6
  %s9 = scalar_select 0, %s8, %s6
  $region1: #{tpu_custom_call.1} parent=0
    #allocation2 [shape = 'u8[2048]{0}', space=vmem, size = 0x800, scoped, tag = 'input window, operand 0, single buffered']
    #allocation3 [shape = 's32[1]{0}', space=sflag, size = 0x4, scoped, tag = 'scoped memory for tpu_custom_call.1']
    #allocation4 [shape = 's32[1]{0}', space=sflag, size = 0x4, scoped, tag = 'scoped memory for tpu_custom_call.1']
    #allocation5 [shape = 'u8[16384]{0}', space=vmem, size = 0x4000, scoped, tag = 'input window, operand 1, single buffered']
    #allocation6 [shape = 's32[1]{0}', space=sflag, size = 0x4, scoped, tag = 'scoped memory for tpu_custom_call.1']
    #allocation7 [shape = 'u8[32768]{0}', space=vmem, size = 0x8000, scoped, tag = 'input window, operand 3, single buffered']
    #allocation8 [shape = 'u8[2048]{0}', space=vmem, size = 0x800, scoped, tag = 'output window, operand 0, single buffered']
    %10 = vsyncpa [#allocation3], 0
    %11 = vsyncpa [#allocation6], 0
    %12 = vsyncpa [#allocation4], 0
    // Predicated region
    $region2: #{tpu_custom_call.1} parent=1 // pred_check
      _
    $region3: #{tpu_custom_call.1} parent=1 // pred_check_branch
      %14 = sbr.rel (0) target = $region5
    $region4: #{tpu_custom_call.1} parent=1 // pred_region
      %s16 = ssub.s32 64, 64
      %17 = vsyncadd [#allocation3], %s16
      %s19 = sshll.u32 [#allocation2], 4
      %s20 = int_to_ptr.vmem [resolvable:$true] %s19
      %22 = dma.hbm_to_vmem [thread:$0]  %s0, 64, %s20, [#allocation3]
    $region5: #{tpu_custom_call.1} parent=1 // pred_fallthru
      _
    // Predicated region
    $region6: #{tpu_custom_call.1} parent=1 // pred_check
      _
    $region7: #{tpu_custom_call.1} parent=1 // pred_check_branch
      %24 = sbr.rel (0) target = $region9
    $region8: #{tpu_custom_call.1} parent=1 // pred_region
      %s26 = ssub.s32 512, 512
      %27 = vsyncadd [#allocation6], %s26
      %s28 = sshll.u32 [#allocation5], 4
      %s29 = int_to_ptr.vmem [resolvable:$true] %s28
      %34 = dma.hbm_to_vmem [thread:$0]  %s1, 512, %s29, [#allocation6], 64, 64, 4
    $region9: #{tpu_custom_call.1} parent=1 // pred_fallthru
      _
    // Predicated region
    $region10: #{tpu_custom_call.1} parent=1 // pred_check
      _
    $region11: #{tpu_custom_call.1} parent=1 // pred_check_branch
      %36 = sbr.rel (0) target = $region13
    $region12: #{tpu_custom_call.1} parent=1 // pred_region
      _
    $region13: #{tpu_custom_call.1} parent=1 // pred_fallthru
      _
    // Predicated region
    $region14: #{tpu_custom_call.1} parent=1 // pred_check
      _
    $region15: #{tpu_custom_call.1} parent=1 // pred_check_branch
      %38 = sbr.rel (0) target = $region17
    $region16: #{tpu_custom_call.1} parent=1 // pred_region
      %s40 = ssub.s32 1024, 1024
      %41 = vsyncadd [#allocation6], %s40
      %s42 = sshll.u32 [#allocation7], 4
      %s43 = int_to_ptr.vmem [resolvable:$true] %s42
      %48 = dma.hbm_to_vmem [thread:$0]  %s3, 1024, %s43, [#allocation6], 64, 64, 4
    $region17: #{tpu_custom_call.1} parent=1 // pred_fallthru
      _
    // Predicated region
    $region18: #{tpu_custom_call.1} parent=1 // pred_check
      _
    $region19: #{tpu_custom_call.1} parent=1 // pred_check_branch
      %50 = sbr.rel (0) target = $region21
    $region20: #{tpu_custom_call.1} parent=1 // pred_region
      _
    $region21: #{tpu_custom_call.1} parent=1 // pred_fallthru
      _
    // Predicated region
    $region22: #{tpu_custom_call.1} parent=1 // pred_check
      _
    $region23: #{tpu_custom_call.1} parent=1 // pred_check_branch
      %52 = sbr.rel (0) target = $region25
    $region24: #{tpu_custom_call.1} parent=1 // pred_region
      %53 = dma.done [#allocation3], 64
    $region25: #{tpu_custom_call.1} parent=1 // pred_fallthru
      _
    // Predicated region
    $region26: #{tpu_custom_call.1} parent=1 // pred_check
      _
    $region27: #{tpu_custom_call.1} parent=1 // pred_check_branch
      %55 = sbr.rel (0) target = $region29
    $region28: #{tpu_custom_call.1} parent=1 // pred_region
      %56 = dma.done [#allocation6], 512
    $region29: #{tpu_custom_call.1} parent=1 // pred_fallthru
      _
    // Predicated region
    $region30: #{tpu_custom_call.1} parent=1 // pred_check
      _
    $region31: #{tpu_custom_call.1} parent=1 // pred_check_branch
      %58 = sbr.rel (0) target = $region33
    $region32: #{tpu_custom_call.1} parent=1 // pred_region
      %59 = dma.done [#allocation6], 1024
    $region33: #{tpu_custom_call.1} parent=1 // pred_fallthru
      _
    %v61 = vld [vmem:[#allocation2] sm:$0xf]
    %v62 = vld [vmem:[#allocation5] sm:$0xf]
    %v63 = vld [vmem:[#allocation5 + $0x4] sm:$0xf]
    %v64 = vld [vmem:[#allocation5 + $0x8] sm:$0xf]
    %v65 = vld [vmem:[#allocation5 + $0xc] sm:$0xf]
    %v66 = vld [vmem:[#allocation5 + $0x10] sm:$0xf]
    %v67 = vld [vmem:[#allocation5 + $0x14] sm:$0xf]
    %v68 = vld [vmem:[#allocation5 + $0x18] sm:$0xf]
    %v69 = vld [vmem:[#allocation5 + $0x1c] sm:$0xf]
    %v70 = vld [vmem:[%s2] sm:$0x1]
    %v72 = vlaneseq
    %v73 = vshrl.u32 %v72, 7
    %v74 = vsub.s32 0, %v73
    %v75 = vrot.slane %v70, %v74
    %v85 = vunpack.c.l.b16 %v62
    %v86 = vunpack.c.l.b16 %v63
    %v87 = vunpack.c.l.b16 %v64
    %v88 = vunpack.c.l.b16 %v65
    %v89 = vunpack.c.l.b16 %v66
    %v90 = vunpack.c.l.b16 %v67
    %v91 = vunpack.c.l.b16 %v68
    %v92 = vunpack.c.l.b16 %v69
    %v93 = vpack.c.b16 %v86, %v85
    %v94 = vpack.c.b16 %v88, %v87
    %v95 = vpack.c.b16 %v90, %v89
    %v96 = vpack.c.b16 %v92, %v91
    %vm101 = vcmask 523264
    %v103 = vsel %vm101, %v61, 0
    %105 = vmatprep.subr.bf16.mxu0 0
    %106 = vmatpush1.bf16.msra.mxu0 %v93
    %107 = vmatprep.subr.bf16.mxu0 0
    %108 = vmatpush1.bf16.msra.mxu0 %v94
    %109 = vmatprep.subr.bf16.mxu0 0
    %110 = vmatpush1.bf16.msra.mxu0 %v95
    %111 = vmatprep.subr.bf16.mxu0 0
    %112 = vmatpush1.bf16.msra.mxu0 %v96
    %113 = vmatprep.subr.bf16.mxu0 0
    %114 = vmatpush1.bf16.msra.mxu0 0
    %115 = vmatprep.subr.bf16.mxu0 0
    %116 = vmatpush1.bf16.msra.mxu0 0
    %117 = vmatprep.subr.bf16.mxu0 0
    %118 = vmatpush1.bf16.msra.mxu0 0
    %119 = vmatprep.subr.bf16.mxu0 0
    %120 = vmatpush1.bf16.msra.mxu0 0
    %121 = vmatprep.subr.bf16.mxu0 0
    %122 = vmatpush1.bf16.msra.mxu0 0
    %123 = vmatprep.subr.bf16.mxu0 0
    %124 = vmatpush1.bf16.msra.mxu0 0
    %125 = vmatprep.subr.bf16.mxu0 0
    %126 = vmatpush1.bf16.msra.mxu0 0
    %127 = vmatprep.subr.bf16.mxu0 0
    %128 = vmatpush1.bf16.msra.mxu0 0
    %129 = vmatprep.subr.bf16.mxu0 0
    %130 = vmatpush1.bf16.msra.mxu0 0
    %131 = vmatprep.subr.bf16.mxu0 0
    %132 = vmatpush1.bf16.msra.mxu0 0
    %133 = vmatprep.subr.bf16.mxu0 0
    %134 = vmatpush1.bf16.msra.mxu0 0
    %135 = vmatprep.subr.bf16.mxu0 0
    %136 = vmatpush1.bf16.msra.mxu0 0
    %137 = vmatprep.mubr.bf16.mxu0 0
    %138 = vmatmul.mubr.bf16.gmra.mrb[0].mxu0 %v103
    %v139 = vpop.f32.mrb[0].mxu0
    %v140 = vadd.f32 %v75, %v139
    %v141 = vpop.f32.mrb[0].mxu0
    %v142 = vpop.f32.mrb[0].mxu0
    %v143 = vpop.f32.mrb[0].mxu0
    %144 = vdwg.mxu0
    %v145 = vmax.f32 %v140, 0.0
    %v146 = vpack.c.bf16 %v145, %v145
    %v147 = vld [vmem:[#allocation7] sm:$0xf]
    %v148 = vld [vmem:[#allocation7 + $0x4] sm:$0xf]
    %v149 = vld [vmem:[#allocation7 + $0x8] sm:$0xf]
    %v150 = vld [vmem:[#allocation7 + $0xc] sm:$0xf]
    %v151 = vld [vmem:[#allocation7 + $0x10] sm:$0xf]
    %v152 = vld [vmem:[#allocation7 + $0x14] sm:$0xf]
    %v153 = vld [vmem:[#allocation7 + $0x18] sm:$0xf]
    %v154 = vld [vmem:[#allocation7 + $0x1c] sm:$0xf]
    %v155 = vld [vmem:[#allocation7 + $0x20] sm:$0xf]
    %v156 = vld [vmem:[#allocation7 + $0x24] sm:$0xf]
    %v157 = vld [vmem:[#allocation7 + $0x28] sm:$0xf]
    %v158 = vld [vmem:[#allocation7 + $0x2c] sm:$0xf]
    %v159 = vld [vmem:[#allocation7 + $0x30] sm:$0xf]
    %v160 = vld [vmem:[#allocation7 + $0x34] sm:$0xf]
    %v161 = vld [vmem:[#allocation7 + $0x38] sm:$0xf]
    %v162 = vld [vmem:[#allocation7 + $0x3c] sm:$0xf]
    %v163 = vld [vmem:[%s4] sm:$0x1]
    %v165 = vlaneseq
    %v166 = vshrl.u32 %v165, 7
    %v167 = vsub.s32 0, %v166
    %v168 = vrot.slane %v163, %v167
    %v186 = vunpack.c.l.b16 %v147
    %v187 = vunpack.c.l.b16 %v148
    %v188 = vunpack.c.l.b16 %v149
    %v189 = vunpack.c.l.b16 %v150
    %v190 = vunpack.c.l.b16 %v151
    %v191 = vunpack.c.l.b16 %v152
    %v192 = vunpack.c.l.b16 %v153
    %v193 = vunpack.c.l.b16 %v154
    %v194 = vunpack.c.l.b16 %v155
    %v195 = vunpack.c.l.b16 %v156
    %v196 = vunpack.c.l.b16 %v157
    %v197 = vunpack.c.l.b16 %v158
    %v198 = vunpack.c.l.b16 %v159
    %v199 = vunpack.c.l.b16 %v160
    %v200 = vunpack.c.l.b16 %v161
    %v201 = vunpack.c.l.b16 %v162
    %v202 = vpack.c.b16 %v187, %v186
    %v203 = vpack.c.b16 %v189, %v188
    %v204 = vpack.c.b16 %v191, %v190
    %v205 = vpack.c.b16 %v193, %v192
    %v206 = vpack.c.b16 %v195, %v194
    %v207 = vpack.c.b16 %v197, %v196
    %v208 = vpack.c.b16 %v199, %v198
    %v209 = vpack.c.b16 %v201, %v200
    %218 = vmatprep.subr.bf16.mxu0 0
    %219 = vmatpush1.bf16.msra.mxu0 %v202
    %220 = vmatprep.subr.bf16.mxu0 0
    %221 = vmatpush1.bf16.msra.mxu0 %v203
    %222 = vmatprep.subr.bf16.mxu0 0
    %223 = vmatpush1.bf16.msra.mxu0 %v204
    %224 = vmatprep.subr.bf16.mxu0 0
    %225 = vmatpush1.bf16.msra.mxu0 %v205
    %226 = vmatprep.subr.bf16.mxu0 0
    %227 = vmatpush1.bf16.msra.mxu0 %v206
    %228 = vmatprep.subr.bf16.mxu0 0
    %229 = vmatpush1.bf16.msra.mxu0 %v207
    %230 = vmatprep.subr.bf16.mxu0 0
    %231 = vmatpush1.bf16.msra.mxu0 %v208
    %232 = vmatprep.subr.bf16.mxu0 0
    %233 = vmatpush1.bf16.msra.mxu0 %v209
    %234 = vmatprep.subr.bf16.mxu0 0
    %235 = vmatpush1.bf16.msra.mxu0 0
    %236 = vmatprep.subr.bf16.mxu0 0
    %237 = vmatpush1.bf16.msra.mxu0 0
    %238 = vmatprep.subr.bf16.mxu0 0
    %239 = vmatpush1.bf16.msra.mxu0 0
    %240 = vmatprep.subr.bf16.mxu0 0
    %241 = vmatpush1.bf16.msra.mxu0 0
    %242 = vmatprep.subr.bf16.mxu0 0
    %243 = vmatpush1.bf16.msra.mxu0 0
    %244 = vmatprep.subr.bf16.mxu0 0
    %245 = vmatpush1.bf16.msra.mxu0 0
    %246 = vmatprep.subr.bf16.mxu0 0
    %247 = vmatpush1.bf16.msra.mxu0 0
    %248 = vmatprep.subr.bf16.mxu0 0
    %249 = vmatpush1.bf16.msra.mxu0 0
    %250 = vmatprep.mubr.bf16.mxu0 0
    %251 = vmatmul.mubr.bf16.gmra.mrb[0].mxu0 %v146
    %v252 = vpop.f32.mrb[0].mxu0
    %v253 = vadd.f32 %v168, %v252
    %v254 = vpop.f32.mrb[0].mxu0
    %v255 = vpop.f32.mrb[0].mxu0
    %v256 = vpop.f32.mrb[0].mxu0
    %257 = vdwg.mxu0
    %v258 = vmul.f32 %v253, %v253
    %259 = vadd.xlane.f32.xlu0 %v258
    %v260 = vpop.xlane.xlu0 %259
    %v261 = vrsqrt.pop %v260
    %v262 = vmul.f32 %v253, %v261
    %v263 = vpack.c.bf16 %v262, %v262
    %264 = vst [vmem:[#allocation8] sm:$0xf] %v263
    // Predicated region
    $region34: #{tpu_custom_call.1} parent=1 // pred_check
      _
    $region35: #{tpu_custom_call.1} parent=1 // pred_check_branch
      %266 = sbr.rel (0) target = $region37
    $region36: #{tpu_custom_call.1} parent=1 // pred_region
      %s268 = ssub.s32 64, 64
      %269 = vsyncadd [#allocation4], %s268
      %s271 = sshll.u32 [#allocation8], 4
      %s272 = int_to_ptr.vmem [resolvable:$true] %s271
      %274 = dma.vmem_to_hbm [thread:$0]  %s272, 64, %s5, [#allocation4]
    $region37: #{tpu_custom_call.1} parent=1 // pred_fallthru
      _
    // Predicated region
    $region38: #{tpu_custom_call.1} parent=1 // pred_check
      _
    $region39: #{tpu_custom_call.1} parent=1 // pred_check_branch
      %276 = sbr.rel (0) target = $region41
    $region40: #{tpu_custom_call.1} parent=1 // pred_region
      %277 = dma.done [#allocation4], 64
    $region41: #{tpu_custom_call.1} parent=1 // pred_fallthru
      _
    %278 = vsyncpa [#allocation3], 1
    %279 = vsyncpa [#allocation6], 1
    %280 = vsyncpa [#allocation4], 1

</llo_original>
